<compile_context>
chip_gen: v5e
topology: v5e:2x2
jax: 0.10.0
libtpu: 0.0.40
codegen_flags: <defaults>
</compile_context>

<pallas_src>
import jax
import jax.numpy as jnp
from jax import lax
from jax.experimental import pallas as pl
from jax.experimental.pallas import tpu as pltpu

# ----------------------------- configuration (small, synthetic) -----------------------------
D_MODEL = 32     # prosody_encoder.encoder_hidden  (input_dim == hidden)
N_SPEAKER = 5    # model_config.n_speaker
LN_EPS = 1e-5


# ----------------------------------- fused Pallas kernel ------------------------------------
def _layer_norm(h, gamma, beta, eps=LN_EPS):
    # torch.nn.LayerNorm: biased variance, eps inside the rsqrt.
    mu = jnp.mean(h, axis=-1, keepdims=True)
    var = jnp.mean((h - mu) ** 2, axis=-1, keepdims=True)
    return (h - mu) * lax.rsqrt(var + eps) * gamma + beta


def _speaker_classifier_kernel(x_ref, w1_ref, w2_ref, w3_ref, vec_ref, b3_ref,
                               pool_ref, o_ref):
    # x_ref:   (B*T, D)     w1: (D, H)   w2: (H, H)   w3: (H, S)
    # vec_ref: (6, H) rows = [b1, g1, be1, b2, g2, be2]
    # b3_ref:  (1, S)       pool_ref: (B, B*T) row-pooling matrix (1/T per token of that batch)
    # o_ref:   (B, S)
    x = x_ref[...]
    vec = vec_ref[...]
    b1, g1, be1 = vec[0:1, :], vec[1:2, :], vec[2:3, :]
    b2, g2, be2 = vec[3:4, :], vec[4:5, :], vec[5:6, :]

    # fc1 -> LayerNorm -> ReLU
    h = jnp.dot(x, w1_ref[...], preferred_element_type=jnp.float32) + b1
    h = jnp.maximum(_layer_norm(h, g1, be1), 0.0)

    # fc2 -> LayerNorm -> ReLU
    h = jnp.dot(h, w2_ref[...], preferred_element_type=jnp.float32) + b2
    h = jnp.maximum(_layer_norm(h, g2, be2), 0.0)

    # fc3 -> LogSoftmax over speakers
    logits = jnp.dot(h, w3_ref[...], preferred_element_type=jnp.float32) + b3_ref[...]
    m = jnp.max(logits, axis=-1, keepdims=True)
    lsm = logits - m - jnp.log(jnp.sum(jnp.exp(logits - m), axis=-1, keepdims=True))

    # mean over time, expressed as a pooling matmul on the MXU.
    o_ref[...] = jnp.dot(pool_ref[...], lsm,
                         preferred_element_type=jnp.float32).astype(o_ref.dtype)


def speaker_classifier(params, x):
    """Forward of SpeakerClassifier.

    x: (B, D) or (B, T, D).  Returns (B, n_speaker) log-probabilities
    (mean over T of per-token log-softmax when x is 3-D, matching the reference).
    GRL forward is identity.
    """
    if x.ndim == 2:          # (B, D) -> treat as T = 1; pooling is then a no-op.
        x = x[:, None, :]
    B, T, D = x.shape
    H = params['w1'].shape[1]
    S = params['w3'].shape[1]

    xf = x.reshape(B * T, D).astype(jnp.float32)                   # lane-dense token slab
    pool = jnp.kron(jnp.eye(B, dtype=jnp.float32),
                    jnp.ones((1, T), jnp.float32)) / float(T)      # (B, B*T)
    vec = jnp.concatenate([params['b1'], params['g1'], params['be1'],
                           params['b2'], params['g2'], params['be2']], axis=0)  # (6, H)

    full2d = lambda shape: pl.BlockSpec(shape, lambda i: (0, 0))

    return pl.pallas_call(
        _speaker_classifier_kernel,
        out_shape=jax.ShapeDtypeStruct((B, S), jnp.float32),
        grid=(1,),
        in_specs=[
            full2d((B * T, D)),            # x
            full2d(params['w1'].shape),    # w1
            full2d(params['w2'].shape),    # w2
            full2d(params['w3'].shape),    # w3
            full2d((6, H)),                # packed [b1,g1,be1,b2,g2,be2]
            full2d(params['b3'].shape),    # b3
            full2d((B, B * T)),            # pooling matrix
        ],
        out_specs=full2d((B, S)),
        compiler_params=pltpu.CompilerParams(
            dimension_semantics=("arbitrary",)),
    )(xf, params['w1'], params['w2'], params['w3'], vec, params['b3'], pool)


# -------------------------------- parameter construction ------------------------------------
def init_params(key, input_dim=D_MODEL, hidden=D_MODEL, n_speaker=N_SPEAKER):
    keys = iter(jax.random.split(key, 16))
    nk = lambda: next(keys)

    def dense(cin, cout):
        # stored as (in, out); forward is x @ w + b (equivalent to torch's x @ W.T + b).
        return (0.1 * jax.random.normal(nk(), (cin, cout), jnp.float32),
                0.02 * jax.random.normal(nk(), (1, cout), jnp.float32))

    def ln(c):
        return (1.0 + 0.05 * jax.random.normal(nk(), (1, c), jnp.float32),
                0.05 * jax.random.normal(nk(), (1, c), jnp.float32))

    w1, b1 = dense(input_dim, hidden)
    g1, be1 = ln(hidden)
    w2, b2 = dense(hidden, hidden)
    g2, be2 = ln(hidden)
    w3, b3 = dense(hidden, n_speaker)
    return {'w1': w1, 'b1': b1, 'g1': g1, 'be1': be1,
            'w2': w2, 'b2': b2, 'g2': g2, 'be2': be2,
            'w3': w3, 'b3': b3}


# --------------------------------- pure-JAX reference ----------------------------------------
def _reference(params, x):
    def ln(h, g, b):
        mu = jnp.mean(h, -1, keepdims=True)
        var = jnp.mean((h - mu) ** 2, -1, keepdims=True)
        return (h - mu) / jnp.sqrt(var + LN_EPS) * g + b

    h = x @ params['w1'] + params['b1']
    h = jax.nn.relu(ln(h, params['g1'], params['be1']))
    h = h @ params['w2'] + params['b2']
    h = jax.nn.relu(ln(h, params['g2'], params['be2']))
    logits = h @ params['w3'] + params['b3']
    lsm = jax.nn.log_softmax(logits, axis=-1)
    return lsm.mean(axis=1) if x.ndim > 2 else lsm


# ---------------------------------------- main -----------------------------------------------
if __name__ == "__main__":
    key = jax.random.PRNGKey(0)
    k_x, k_par = jax.random.split(key, 2)

    B, T = 2, 8
    x = jax.random.normal(k_x, (B, T, D_MODEL), jnp.float32)   # prosody features (B, T, hidden)
    params = init_params(k_par)

    score = speaker_classifier(params, x)
    jax.block_until_ready(score)
    assert score.shape == (B, N_SPEAKER)
    assert bool(jnp.all(jnp.isfinite(score)))
    assert bool(jnp.allclose(score, _reference(params, x), rtol=1e-4, atol=1e-4))

    # also exercise the 2-D input path (no time mean in the reference; identical via T=1 pool)
    x2d = x[:, 0, :]
    score2d = speaker_classifier(params, x2d)
    jax.block_until_ready(score2d)
    assert score2d.shape == (B, N_SPEAKER)
    assert bool(jnp.allclose(score2d, _reference(params, x2d), rtol=1e-4, atol=1e-4))

    print("KERNEL_OK")
</pallas_src>

<mosaic_0001>
module attributes {stable_mosaic.version = 11 : i64} {
  func.func @_speaker_classifier_kernel(%arg0: i32, %arg1: memref<16x32xf32, #tpu.memory_space<vmem>>, %arg2: memref<32x32xf32, #tpu.memory_space<vmem>>, %arg3: memref<32x32xf32, #tpu.memory_space<vmem>>, %arg4: memref<32x5xf32, #tpu.memory_space<vmem>>, %arg5: memref<6x32xf32, #tpu.memory_space<vmem>>, %arg6: memref<1x5xf32, #tpu.memory_space<vmem>>, %arg7: memref<2x16xf32, #tpu.memory_space<vmem>>, %arg8: memref<2x5xf32, #tpu.memory_space<vmem>>) attributes {dimension_semantics = [#tpu.dimension_semantics<arbitrary>], iteration_bounds = array<i64: 1>, scalar_prefetch = 0 : i64, scratch_operands = 0 : i64, tpu.core_type = #tpu.core_type<tc>, window_params = [{pipeline_mode = #tpu.pipeline_mode<synchronous>, transform_indices = @transform_0, window_bounds = array<i64: 16, 32>}, {pipeline_mode = #tpu.pipeline_mode<synchronous>, transform_indices = @transform_1, window_bounds = array<i64: 32, 32>}, {pipeline_mode = #tpu.pipeline_mode<synchronous>, transform_indices = @transform_2, window_bounds = array<i64: 32, 32>}, {pipeline_mode = #tpu.pipeline_mode<synchronous>, transform_indices = @transform_3, window_bounds = array<i64: 32, 5>}, {pipeline_mode = #tpu.pipeline_mode<synchronous>, transform_indices = @transform_4, window_bounds = array<i64: 6, 32>}, {pipeline_mode = #tpu.pipeline_mode<synchronous>, transform_indices = @transform_5, window_bounds = array<i64: 1, 5>}, {pipeline_mode = #tpu.pipeline_mode<synchronous>, transform_indices = @transform_6, window_bounds = array<i64: 2, 16>}, {pipeline_mode = #tpu.pipeline_mode<synchronous>, transform_indices = @transform_7, window_bounds = array<i64: 2, 5>}]} {
    %c0 = arith.constant 0 : index
    %c0_0 = arith.constant 0 : index
    %0 = vector.load %arg1[%c0, %c0_0] : memref<16x32xf32, #tpu.memory_space<vmem>>, vector<16x32xf32>
    %c0_1 = arith.constant 0 : index
    %c0_2 = arith.constant 0 : index
    %1 = vector.load %arg5[%c0_1, %c0_2] : memref<6x32xf32, #tpu.memory_space<vmem>>, vector<6x32xf32>
    %2 = vector.extract_strided_slice %1 {offsets = [0, 0], sizes = [1, 32], strides = [1, 1]} : vector<6x32xf32> to vector<1x32xf32>
    %3 = vector.extract_strided_slice %1 {offsets = [1, 0], sizes = [1, 32], strides = [1, 1]} : vector<6x32xf32> to vector<1x32xf32>
    %4 = vector.extract_strided_slice %1 {offsets = [2, 0], sizes = [1, 32], strides = [1, 1]} : vector<6x32xf32> to vector<1x32xf32>
    %5 = vector.extract_strided_slice %1 {offsets = [3, 0], sizes = [1, 32], strides = [1, 1]} : vector<6x32xf32> to vector<1x32xf32>
    %6 = vector.extract_strided_slice %1 {offsets = [4, 0], sizes = [1, 32], strides = [1, 1]} : vector<6x32xf32> to vector<1x32xf32>
    %7 = vector.extract_strided_slice %1 {offsets = [5, 0], sizes = [1, 32], strides = [1, 1]} : vector<6x32xf32> to vector<1x32xf32>
    %c0_3 = arith.constant 0 : index
    %c0_4 = arith.constant 0 : index
    %8 = vector.load %arg2[%c0_3, %c0_4] : memref<32x32xf32, #tpu.memory_space<vmem>>, vector<32x32xf32>
    %cst = arith.constant dense<0.000000e+00> : vector<16x32xf32>
    %9 = tpu.matmul %0, %8, %cst {dimension_numbers = #tpu.dot_dimension_numbers<[1], [0], [0], [1], [0, 0, 1, 1], [], []>} : vector<16x32xf32>, vector<32x32xf32>, vector<16x32xf32> -> vector<16x32xf32>
    %10 = vector.broadcast %2 : vector<1x32xf32> to vector<16x32xf32>
    %11 = arith.addf %9, %10 : vector<16x32xf32>
    %cst_5 = arith.constant dense<0.000000e+00> : vector<16xf32>
    %12 = vector.multi_reduction <add>, %11, %cst_5 [1] : vector<16x32xf32> to vector<16xf32>
    %13 = vector.shape_cast %12 : vector<16xf32> to vector<16x1xf32>
    %cst_6 = arith.constant 3.200000e+01 : f32
    %14 = vector.broadcast %cst_6 : f32 to vector<16x1xf32>
    %15 = arith.divf %13, %14 : vector<16x1xf32>
    %16 = vector.broadcast %15 : vector<16x1xf32> to vector<16x32xf32>
    %17 = arith.subf %11, %16 : vector<16x32xf32>
    %18 = arith.mulf %17, %17 : vector<16x32xf32>
    %cst_7 = arith.constant dense<0.000000e+00> : vector<16xf32>
    %19 = vector.multi_reduction <add>, %18, %cst_7 [1] : vector<16x32xf32> to vector<16xf32>
    %20 = vector.shape_cast %19 : vector<16xf32> to vector<16x1xf32>
    %cst_8 = arith.constant 3.200000e+01 : f32
    %21 = vector.broadcast %cst_8 : f32 to vector<16x1xf32>
    %22 = arith.divf %20, %21 : vector<16x1xf32>
    %23 = vector.broadcast %15 : vector<16x1xf32> to vector<16x32xf32>
    %24 = arith.subf %11, %23 : vector<16x32xf32>
    %cst_9 = arith.constant 9.99999974E-6 : f32
    %25 = vector.broadcast %cst_9 : f32 to vector<16x1xf32>
    %26 = arith.addf %22, %25 : vector<16x1xf32>
    %27 = math.rsqrt %26 : vector<16x1xf32>
    %28 = vector.broadcast %27 : vector<16x1xf32> to vector<16x32xf32>
    %29 = arith.mulf %24, %28 : vector<16x32xf32>
    %30 = vector.broadcast %3 : vector<1x32xf32> to vector<16x32xf32>
    %31 = arith.mulf %29, %30 : vector<16x32xf32>
    %32 = vector.broadcast %4 : vector<1x32xf32> to vector<16x32xf32>
    %33 = arith.addf %31, %32 : vector<16x32xf32>
    %cst_10 = arith.constant 0.000000e+00 : f32
    %34 = vector.broadcast %cst_10 : f32 to vector<16x32xf32>
    %35 = arith.maximumf %33, %34 : vector<16x32xf32>
    %c0_11 = arith.constant 0 : index
    %c0_12 = arith.constant 0 : index
    %36 = vector.load %arg3[%c0_11, %c0_12] : memref<32x32xf32, #tpu.memory_space<vmem>>, vector<32x32xf32>
    %cst_13 = arith.constant dense<0.000000e+00> : vector<16x32xf32>
    %37 = tpu.matmul %35, %36, %cst_13 {dimension_numbers = #tpu.dot_dimension_numbers<[1], [0], [0], [1], [0, 0, 1, 1], [], []>} : vector<16x32xf32>, vector<32x32xf32>, vector<16x32xf32> -> vector<16x32xf32>
    %38 = vector.broadcast %5 : vector<1x32xf32> to vector<16x32xf32>
    %39 = arith.addf %37, %38 : vector<16x32xf32>
    %cst_14 = arith.constant dense<0.000000e+00> : vector<16xf32>
    %40 = vector.multi_reduction <add>, %39, %cst_14 [1] : vector<16x32xf32> to vector<16xf32>
    %41 = vector.shape_cast %40 : vector<16xf32> to vector<16x1xf32>
    %cst_15 = arith.constant 3.200000e+01 : f32
    %42 = vector.broadcast %cst_15 : f32 to vector<16x1xf32>
    %43 = arith.divf %41, %42 : vector<16x1xf32>
    %44 = vector.broadcast %43 : vector<16x1xf32> to vector<16x32xf32>
    %45 = arith.subf %39, %44 : vector<16x32xf32>
    %46 = arith.mulf %45, %45 : vector<16x32xf32>
    %cst_16 = arith.constant dense<0.000000e+00> : vector<16xf32>
    %47 = vector.multi_reduction <add>, %46, %cst_16 [1] : vector<16x32xf32> to vector<16xf32>
    %48 = vector.shape_cast %47 : vector<16xf32> to vector<16x1xf32>
    %cst_17 = arith.constant 3.200000e+01 : f32
    %49 = vector.broadcast %cst_17 : f32 to vector<16x1xf32>
    %50 = arith.divf %48, %49 : vector<16x1xf32>
    %51 = vector.broadcast %43 : vector<16x1xf32> to vector<16x32xf32>
    %52 = arith.subf %39, %51 : vector<16x32xf32>
    %cst_18 = arith.constant 9.99999974E-6 : f32
    %53 = vector.broadcast %cst_18 : f32 to vector<16x1xf32>
    %54 = arith.addf %50, %53 : vector<16x1xf32>
    %55 = math.rsqrt %54 : vector<16x1xf32>
    %56 = vector.broadcast %55 : vector<16x1xf32> to vector<16x32xf32>
    %57 = arith.mulf %52, %56 : vector<16x32xf32>
    %58 = vector.broadcast %6 : vector<1x32xf32> to vector<16x32xf32>
    %59 = arith.mulf %57, %58 : vector<16x32xf32>
    %60 = vector.broadcast %7 : vector<1x32xf32> to vector<16x32xf32>
    %61 = arith.addf %59, %60 : vector<16x32xf32>
    %cst_19 = arith.constant 0.000000e+00 : f32
    %62 = vector.broadcast %cst_19 : f32 to vector<16x32xf32>
    %63 = arith.maximumf %61, %62 : vector<16x32xf32>
    %c0_20 = arith.constant 0 : index
    %c0_21 = arith.constant 0 : index
    %64 = vector.load %arg4[%c0_20, %c0_21] : memref<32x5xf32, #tpu.memory_space<vmem>>, vector<32x5xf32>
    %cst_22 = arith.constant dense<0.000000e+00> : vector<16x5xf32>
    %65 = tpu.matmul %63, %64, %cst_22 {dimension_numbers = #tpu.dot_dimension_numbers<[1], [0], [0], [1], [0, 0, 1, 1], [], []>} : vector<16x32xf32>, vector<32x5xf32>, vector<16x5xf32> -> vector<16x5xf32>
    %c0_23 = arith.constant 0 : index
    %c0_24 = arith.constant 0 : index
    %66 = vector.load %arg6[%c0_23, %c0_24] : memref<1x5xf32, #tpu.memory_space<vmem>>, vector<1x5xf32>
    %67 = vector.broadcast %66 : vector<1x5xf32> to vector<16x5xf32>
    %68 = arith.addf %65, %67 : vector<16x5xf32>
    %cst_25 = arith.constant dense<0xFF800000> : vector<16xf32>
    %69 = vector.multi_reduction <maximumf>, %68, %cst_25 [1] : vector<16x5xf32> to vector<16xf32>
    %70 = vector.shape_cast %69 : vector<16xf32> to vector<16x1xf32>
    %71 = vector.broadcast %70 : vector<16x1xf32> to vector<16x5xf32>
    %72 = arith.subf %68, %71 : vector<16x5xf32>
    %73 = vector.broadcast %70 : vector<16x1xf32> to vector<16x5xf32>
    %74 = arith.subf %68, %73 : vector<16x5xf32>
    %75 = math.exp %74 : vector<16x5xf32>
    %cst_26 = arith.constant dense<0.000000e+00> : vector<16xf32>
    %76 = vector.multi_reduction <add>, %75, %cst_26 [1] : vector<16x5xf32> to vector<16xf32>
    %77 = vector.shape_cast %76 : vector<16xf32> to vector<16x1xf32>
    %78 = math.log %77 : vector<16x1xf32>
    %79 = vector.broadcast %78 : vector<16x1xf32> to vector<16x5xf32>
    %80 = arith.subf %72, %79 : vector<16x5xf32>
    %c0_27 = arith.constant 0 : index
    %c0_28 = arith.constant 0 : index
    %81 = vector.load %arg7[%c0_27, %c0_28] : memref<2x16xf32, #tpu.memory_space<vmem>>, vector<2x16xf32>
    %cst_29 = arith.constant dense<0.000000e+00> : vector<2x5xf32>
    %82 = tpu.matmul %81, %80, %cst_29 {dimension_numbers = #tpu.dot_dimension_numbers<[1], [0], [0], [1], [0, 0, 1, 1], [], []>} : vector<2x16xf32>, vector<16x5xf32>, vector<2x5xf32> -> vector<2x5xf32>
    %c0_30 = arith.constant 0 : index
    %c0_31 = arith.constant 0 : index
    %83 = vector.load %arg8[%c0_30, %c0_31] : memref<2x5xf32, #tpu.memory_space<vmem>>, vector<2x5xf32>
    tpu.vector_store %arg8[%c0_30, %c0_31], %82 {strides = array<i32>} : memref<2x5xf32, #tpu.memory_space<vmem>>, vector<2x5xf32>,
    return
  }
  func.func @transform_0(%arg0: i32) -> (i32, i32) {
    %c0_i32 = arith.constant 0 : i32
    %c0_i32_0 = arith.constant 0 : i32
    %c0_i32_1 = arith.constant 0 : i32
    return %c0_i32, %c0_i32_0 : i32, i32
  }
  func.func @transform_1(%arg0: i32) -> (i32, i32) {
    %c0_i32 = arith.constant 0 : i32
    %c0_i32_0 = arith.constant 0 : i32
    %c0_i32_1 = arith.constant 0 : i32
    return %c0_i32, %c0_i32_0 : i32, i32
  }
  func.func @transform_2(%arg0: i32) -> (i32, i32) {
    %c0_i32 = arith.constant 0 : i32
    %c0_i32_0 = arith.constant 0 : i32
    %c0_i32_1 = arith.constant 0 : i32
    return %c0_i32, %c0_i32_0 : i32, i32
  }
  func.func @transform_3(%arg0: i32) -> (i32, i32) {
    %c0_i32 = arith.constant 0 : i32
    %c0_i32_0 = arith.constant 0 : i32
    %c0_i32_1 = arith.constant 0 : i32
    return %c0_i32, %c0_i32_0 : i32, i32
  }
  func.func @transform_4(%arg0: i32) -> (i32, i32) {
    %c0_i32 = arith.constant 0 : i32
    %c0_i32_0 = arith.constant 0 : i32
    %c0_i32_1 = arith.constant 0 : i32
    return %c0_i32, %c0_i32_0 : i32, i32
  }
  func.func @transform_5(%arg0: i32) -> (i32, i32) {
    %c0_i32 = arith.constant 0 : i32
    %c0_i32_0 = arith.constant 0 : i32
    %c0_i32_1 = arith.constant 0 : i32
    return %c0_i32, %c0_i32_0 : i32, i32
  }
  func.func @transform_6(%arg0: i32) -> (i32, i32) {
    %c0_i32 = arith.constant 0 : i32
    %c0_i32_0 = arith.constant 0 : i32
    %c0_i32_1 = arith.constant 0 : i32
    return %c0_i32, %c0_i32_0 : i32, i32
  }
  func.func @transform_7(%arg0: i32) -> (i32, i32) {
    %c0_i32 = arith.constant 0 : i32
    %c0_i32_0 = arith.constant 0 : i32
    %c0_i32_1 = arith.constant 0 : i32
    return %c0_i32, %c0_i32_0 : i32, i32
  }
}

</mosaic_0001>

<llo_original>
// kernel: tpu_custom_call.1
$region0: #{tpu_custom_call.1}
  #allocation0 [shape = 'u32[]', space=smem, size = 0x4, offset = 0x4, fixed_abs, tag = 'smem constant byte address 0x4 - core index']
  #allocation1 [shape = 'u32[72,128]{1,0:T(1,128)}', space=vmem, size = 0x9000, scoped, tag = 'internal scratch']
  %s0 = inlined_call_operand.hbm [shape: f32[16,32], index: 0, kind: input, shape index: {}]
  %s1 = inlined_call_operand.vmem [shape: f32[32,32], index: 1, kind: input, shape index: {}]
  %s2 = inlined_call_operand.hbm [shape: f32[32,32], index: 2, kind: input, shape index: {}]
  %s3 = inlined_call_operand.vmem [shape: f32[32,5], index: 3, kind: input, shape index: {}]
  %s4 = inlined_call_operand.vmem [shape: f32[6,32], index: 4, kind: input, shape index: {}]
  %s5 = inlined_call_operand.vmem [shape: f32[1,5], index: 5, kind: input, shape index: {}]
  %s6 = inlined_call_operand.vmem [shape: f32[2,16], index: 6, kind: input, shape index: {}]
  %s7 = inlined_call_operand.hbm [shape: f32[2,5], index: 7, kind: output, shape index: {}]
  %s8 = sld [smem:[#allocation0]]
  $region46: #{tpu_custom_call.1} parent=0
    _
  %s10 = ssub.s32 1, %s8
  %s11 = scalar_select 0, %s10, %s8
  $region1: #{tpu_custom_call.1} parent=0
    #allocation2 [shape = 'u8[8192]{0}', space=vmem, size = 0x2000, scoped, tag = 'input window, operand 0, single buffered']
    #allocation3 [shape = 's32[1]{0}', space=sflag, size = 0x4, scoped, tag = 'scoped memory for tpu_custom_call.1']
    #allocation4 [shape = 's32[1]{0}', space=sflag, size = 0x4, scoped, tag = 'scoped memory for tpu_custom_call.1']
    #allocation5 [shape = 'u8[16384]{0}', space=vmem, size = 0x4000, scoped, tag = 'input window, operand 2, single buffered']
    #allocation6 [shape = 's32[1]{0}', space=sflag, size = 0x4, scoped, tag = 'scoped memory for tpu_custom_call.1']
    #allocation7 [shape = 'u8[1024]{0}', space=vmem, size = 0x400, scoped, tag = 'output window, operand 0, single buffered']
    %12 = vsyncpa [#allocation3], 0
    %13 = vsyncpa [#allocation6], 0
    %14 = vsyncpa [#allocation4], 0
    // Predicated region
    $region2: #{tpu_custom_call.1} parent=1 // pred_check
      _
    $region3: #{tpu_custom_call.1} parent=1 // pred_check_branch
      %16 = sbr.rel (0) target = $region5
    $region4: #{tpu_custom_call.1} parent=1 // pred_region
      %18 = vsyncadd [#allocation3], 0
      %s19 = sshll.u32 %s0, 4
      %s20 = int_to_ptr.hbm [resolvable:$true] %s19
      %s21 = sshll.u32 [#allocation2], 4
      %s22 = int_to_ptr.vmem [resolvable:$true] %s21
      %27 = dma.hbm_to_vmem [thread:$0]  %s20, 256, %s22, [#allocation3], 128, 128, 8
    $region5: #{tpu_custom_call.1} parent=1 // pred_fallthru
      _
    // Predicated region
    $region6: #{tpu_custom_call.1} parent=1 // pred_check
      _
    $region7: #{tpu_custom_call.1} parent=1 // pred_check_branch
      %29 = sbr.rel (0) target = $region9
    $region8: #{tpu_custom_call.1} parent=1 // pred_region
      _
    $region9: #{tpu_custom_call.1} parent=1 // pred_fallthru
      _
    // Predicated region
    $region10: #{tpu_custom_call.1} parent=1 // pred_check
      _
    $region11: #{tpu_custom_call.1} parent=1 // pred_check_branch
      %31 = sbr.rel (0) target = $region13
    $region12: #{tpu_custom_call.1} parent=1 // pred_region
      %33 = vsyncadd [#allocation6], 0
      %s34 = sshll.u32 %s2, 4
      %s35 = int_to_ptr.hbm [resolvable:$true] %s34
      %s36 = sshll.u32 [#allocation5], 4
      %s37 = int_to_ptr.vmem [resolvable:$true] %s36
      %42 = dma.hbm_to_vmem [thread:$0]  %s35, 512, %s37, [#allocation6], 128, 128, 8
    $region13: #{tpu_custom_call.1} parent=1 // pred_fallthru
      _
    // Predicated region
    $region14: #{tpu_custom_call.1} parent=1 // pred_check
      _
    $region15: #{tpu_custom_call.1} parent=1 // pred_check_branch
      %44 = sbr.rel (0) target = $region17
    $region16: #{tpu_custom_call.1} parent=1 // pred_region
      _
    $region17: #{tpu_custom_call.1} parent=1 // pred_fallthru
      _
    // Predicated region
    $region18: #{tpu_custom_call.1} parent=1 // pred_check
      _
    $region19: #{tpu_custom_call.1} parent=1 // pred_check_branch
      %46 = sbr.rel (0) target = $region21
    $region20: #{tpu_custom_call.1} parent=1 // pred_region
      _
    $region21: #{tpu_custom_call.1} parent=1 // pred_fallthru
      _
    // Predicated region
    $region22: #{tpu_custom_call.1} parent=1 // pred_check
      _
    $region23: #{tpu_custom_call.1} parent=1 // pred_check_branch
      %48 = sbr.rel (0) target = $region25
    $region24: #{tpu_custom_call.1} parent=1 // pred_region
      _
    $region25: #{tpu_custom_call.1} parent=1 // pred_fallthru
      _
    // Predicated region
    $region26: #{tpu_custom_call.1} parent=1 // pred_check
      _
    $region27: #{tpu_custom_call.1} parent=1 // pred_check_branch
      %50 = sbr.rel (0) target = $region29
    $region28: #{tpu_custom_call.1} parent=1 // pred_region
      _
    $region29: #{tpu_custom_call.1} parent=1 // pred_fallthru
      _
    // Predicated region
    $region30: #{tpu_custom_call.1} parent=1 // pred_check
      _
    $region31: #{tpu_custom_call.1} parent=1 // pred_check_branch
      %52 = sbr.rel (0) target = $region33
    $region32: #{tpu_custom_call.1} parent=1 // pred_region
      %54 = dma.done [#allocation3], 256
    $region33: #{tpu_custom_call.1} parent=1 // pred_fallthru
      _
    // Predicated region
    $region34: #{tpu_custom_call.1} parent=1 // pred_check
      _
    $region35: #{tpu_custom_call.1} parent=1 // pred_check_branch
      %56 = sbr.rel (0) target = $region37
    $region36: #{tpu_custom_call.1} parent=1 // pred_region
      %58 = dma.done [#allocation6], 512
    $region37: #{tpu_custom_call.1} parent=1 // pred_fallthru
      _
    %v59 = vld [vmem:[#allocation2] sm:$0xff]
    %v60 = vld [vmem:[#allocation2 + $0x8] sm:$0xff]
    %v61 = vld [vmem:[%s4] sm:$0x3f]
    %v62 = vld [vmem:[%s1] sm:$0xff]
    %v63 = vld [vmem:[%s1 + $0x8] sm:$0xff]
    %v64 = vld [vmem:[%s1 + $0x10] sm:$0xff]
    %v65 = vld [vmem:[%s1 + $0x18] sm:$0xff]
    %v66 = vperm.slane %v61, 0
    %vm67 = vcmask 261120
    %v69 = vsel %vm67, %v59, 0
    %v72 = vsel %vm67, %v60, 0
    %74 = vmatpush.msra.mxu0 0.0
    %75 = vmatpush.msra.mxu0 0.0
    %76 = vmatpush.msra.mxu0 0.0
    %77 = vmatpush.msra.mxu0 0.0
    %78 = vmatpush.msra.mxu0 0.0
    %79 = vmatpush.msra.mxu0 0.0
    %80 = vmatpush.msra.mxu0 0.0
    %81 = vmatpush.msra.mxu0 0.0
    %82 = vmatpush.msra.mxu0 0.0
    %83 = vmatpush.msra.mxu0 0.0
    %84 = vmatpush.msra.mxu0 0.0
    %85 = vmatpush.msra.mxu0 0.0
    %86 = vmatpush.msra.mxu0 %v65
    %87 = vmatpush.msra.mxu0 %v64
    %88 = vmatpush.msra.mxu0 %v63
    %89 = vmatpush.msra.mxu0 %v62
    %90 = vmatmul.f32.gmra.mxu0 %v69
    %v91 = vpop.f32.mrf.mxu0
    %v92 = vadd.f32 %v66, %v91
    %93 = vmatmul.f32.gmra.mxu0 %v72
    %v94 = vpop.f32.mrf.mxu0
    %v95 = vadd.f32 %v66, %v94
    %96 = vdwg.mxu0
    %v97 = vsel %vm67, %v92, 0.0
    %98 = vadd.xlane.f32.xlu0 %v97
    %v99 = vpop.xlane.xlu0 %98
    %v100 = vsel %vm67, %v95, 0.0
    %101 = vadd.xlane.f32.xlu0 %v100
    %v102 = vpop.xlane.xlu0 %101
    %v103 = vrcp.pop 32.0
    %v104 = vmul.f32 32.0, %v103
    %v105 = vsub.f32 1.0, %v104
    %v106 = vmul.f32 %v103, %v105
    %v107 = vadd.f32 %v103, %v106
    %vm108 = vweird.f32 %v103
    %v109 = vsel %vm108, %v103, %v107
    %v110 = vmul.f32 %v99, %v109
    %v111 = vmul.f32 %v102, %v109
    %v112 = vsub.f32 %v92, %v110
    %v113 = vsub.f32 %v95, %v111
    %v114 = vmul.f32 %v112, %v112
    %v115 = vmul.f32 %v113, %v113
    %v116 = vsel %vm67, %v114, 0.0
    %117 = vadd.xlane.f32.xlu0 %v116
    %v118 = vpop.xlane.xlu0 %117
    %v119 = vsel %vm67, %v115, 0.0
    %120 = vadd.xlane.f32.xlu0 %v119
    %v121 = vpop.xlane.xlu0 %120
    %v122 = vmul.f32 %v118, %v109
    %v123 = vmul.f32 %v121, %v109
    %v124 = vadd.f32 %v122, 1e-05
    %v125 = vadd.f32 %v123, 1e-05
    %v126 = vrsqrt.pop %v124
    %v127 = vmul.f32 %v126, %v124
    %v128 = vmul.f32 %v127, %v126
    %v129 = vmul.f32 0.5, %v128
    %v130 = vsub.f32 1.5, %v129
    %v131 = vmul.f32 %v126, %v130
    %vm132 = vweird.f32 %v124
    %vm133 = vweird.f32 %v126
    %vm134 = vmor %vm132, %vm133
    %v135 = vsel %vm134, %v126, %v131
    %v136 = vrsqrt.pop %v125
    %v137 = vmul.f32 %v136, %v125
    %v138 = vmul.f32 %v137, %v136
    %v139 = vmul.f32 0.5, %v138
    %v140 = vsub.f32 1.5, %v139
    %v141 = vmul.f32 %v136, %v140
    %vm142 = vweird.f32 %v125
    %vm143 = vweird.f32 %v136
    %vm144 = vmor %vm142, %vm143
    %v145 = vsel %vm144, %v136, %v141
    %v146 = vmul.f32 %v112, %v135
    %v147 = vmul.f32 %v113, %v145
    %v148 = vperm.slane %v61, 1
    %v149 = vmul.f32 %v146, %v148
    %v150 = vmul.f32 %v147, %v148
    %v151 = vperm.slane %v61, 2
    %v152 = vadd.f32 %v149, %v151
    %v153 = vadd.f32 %v150, %v151
    %v154 = vmax.f32 %v152, 0.0
    %v155 = vmax.f32 %v153, 0.0
    %v156 = vld [vmem:[#allocation5] sm:$0xff]
    %v157 = vld [vmem:[#allocation5 + $0x8] sm:$0xff]
    %v158 = vld [vmem:[#allocation5 + $0x10] sm:$0xff]
    %v159 = vld [vmem:[#allocation5 + $0x18] sm:$0xff]
    %v160 = vperm.slane %v61, 3
    %v162 = vsel %vm67, %v154, 0
    %v165 = vsel %vm67, %v155, 0
    %167 = vmatpush.msra.mxu0 0.0
    %168 = vmatpush.msra.mxu0 0.0
    %169 = vmatpush.msra.mxu0 0.0
    %170 = vmatpush.msra.mxu0 0.0
    %171 = vmatpush.msra.mxu0 0.0
    %172 = vmatpush.msra.mxu0 0.0
    %173 = vmatpush.msra.mxu0 0.0
    %174 = vmatpush.msra.mxu0 0.0
    %175 = vmatpush.msra.mxu0 0.0
    %176 = vmatpush.msra.mxu0 0.0
    %177 = vmatpush.msra.mxu0 0.0
    %178 = vmatpush.msra.mxu0 0.0
    %179 = vmatpush.msra.mxu0 %v159
    %180 = vmatpush.msra.mxu0 %v158
    %181 = vmatpush.msra.mxu0 %v157
    %182 = vmatpush.msra.mxu0 %v156
    %183 = vmatmul.f32.gmra.mxu0 %v162
    %v184 = vpop.f32.mrf.mxu0
    %v185 = vadd.f32 %v160, %v184
    %186 = vmatmul.f32.gmra.mxu0 %v165
    %v187 = vpop.f32.mrf.mxu0
    %v188 = vadd.f32 %v160, %v187
    %189 = vdwg.mxu0
    %v190 = vsel %vm67, %v185, 0.0
    %191 = vadd.xlane.f32.xlu0 %v190
    %v192 = vpop.xlane.xlu0 %191
    %v193 = vsel %vm67, %v188, 0.0
    %194 = vadd.xlane.f32.xlu0 %v193
    %v195 = vpop.xlane.xlu0 %194
    %v196 = vmul.f32 %v192, %v109
    %v197 = vmul.f32 %v195, %v109
    %v198 = vsub.f32 %v185, %v196
    %v199 = vsub.f32 %v188, %v197
    %v200 = vmul.f32 %v198, %v198
    %v201 = vmul.f32 %v199, %v199
    %v202 = vsel %vm67, %v200, 0.0
    %203 = vadd.xlane.f32.xlu0 %v202
    %v204 = vpop.xlane.xlu0 %203
    %v205 = vsel %vm67, %v201, 0.0
    %206 = vadd.xlane.f32.xlu0 %v205
    %v207 = vpop.xlane.xlu0 %206
    %v208 = vmul.f32 %v204, %v109
    %v209 = vmul.f32 %v207, %v109
    %v210 = vadd.f32 %v208, 1e-05
    %v211 = vadd.f32 %v209, 1e-05
    %v212 = vrsqrt.pop %v210
    %v213 = vmul.f32 %v212, %v210
    %v214 = vmul.f32 %v213, %v212
    %v215 = vmul.f32 0.5, %v214
    %v216 = vsub.f32 1.5, %v215
    %v217 = vmul.f32 %v212, %v216
    %vm218 = vweird.f32 %v210
    %vm219 = vweird.f32 %v212
    %vm220 = vmor %vm218, %vm219
    %v221 = vsel %vm220, %v212, %v217
    %v222 = vrsqrt.pop %v211
    %v223 = vmul.f32 %v222, %v211
    %v224 = vmul.f32 %v223, %v222
    %v225 = vmul.f32 0.5, %v224
    %v226 = vsub.f32 1.5, %v225
    %v227 = vmul.f32 %v222, %v226
    %vm228 = vweird.f32 %v211
    %vm229 = vweird.f32 %v222
    %vm230 = vmor %vm228, %vm229
    %v231 = vsel %vm230, %v222, %v227
    %v232 = vmul.f32 %v198, %v221
    %v233 = vmul.f32 %v199, %v231
    %v234 = vperm.slane %v61, 4
    %v235 = vmul.f32 %v232, %v234
    %v236 = vmul.f32 %v233, %v234
    %v237 = vperm.slane %v61, 5
    %v238 = vadd.f32 %v235, %v237
    %v239 = vadd.f32 %v236, %v237
    %v240 = vmax.f32 %v238, 0.0
    %v241 = vmax.f32 %v239, 0.0
    %v242 = vld [vmem:[%s3] sm:$0xff]
    %v243 = vld [vmem:[%s3 + $0x8] sm:$0xff]
    %v244 = vld [vmem:[%s3 + $0x10] sm:$0xff]
    %v245 = vld [vmem:[%s3 + $0x18] sm:$0xff]
    %v246 = vld [vmem:[%s5] sm:$0x1]
    %v248 = vperm.slane %v246, 0
    %v251 = vsel %vm67, %v240, 0
    %v254 = vsel %vm67, %v241, 0
    %256 = vmatpush.msra.mxu0 0.0
    %257 = vmatpush.msra.mxu0 0.0
    %258 = vmatpush.msra.mxu0 0.0
    %259 = vmatpush.msra.mxu0 0.0
    %260 = vmatpush.msra.mxu0 0.0
    %261 = vmatpush.msra.mxu0 0.0
    %262 = vmatpush.msra.mxu0 0.0
    %263 = vmatpush.msra.mxu0 0.0
    %264 = vmatpush.msra.mxu0 0.0
    %265 = vmatpush.msra.mxu0 0.0
    %266 = vmatpush.msra.mxu0 0.0
    %267 = vmatpush.msra.mxu0 0.0
    %268 = vmatpush.msra.mxu0 %v245
    %269 = vmatpush.msra.mxu0 %v244
    %270 = vmatpush.msra.mxu0 %v243
    %271 = vmatpush.msra.mxu0 %v242
    %272 = vmatmul.f32.gmra.mxu0 %v251
    %v273 = vpop.f32.mrf.mxu0
    %v274 = vadd.f32 %v248, %v273
    %275 = vmatmul.f32.gmra.mxu0 %v254
    %v276 = vpop.f32.mrf.mxu0
    %v277 = vadd.f32 %v248, %v276
    %278 = vdwg.mxu0
    %vm279 = vcmask 39936
    %v280 = vsel %vm279, %v274, -inf
    %281 = vmax.xlane.f32.xlu0 %v280
    %v282 = vpop.xlane.xlu0 %281
    %v283 = vsel %vm279, %v277, -inf
    %284 = vmax.xlane.f32.xlu0 %v283
    %v285 = vpop.xlane.xlu0 %284
    %v286 = vsub.f32 %v274, %v282
    %v287 = vsub.f32 %v277, %v285
    %v288 = vmul.f32 %v286, 1.442695
    %v289 = vpow.pop %v288
    %v290 = vmul.f32 %v287, 1.442695
    %v291 = vpow.pop %v290
    %v292 = vsel %vm279, %v289, 0.0
    %293 = vadd.xlane.f32.xlu0 %v292
    %v294 = vpop.xlane.xlu0 %293
    %v295 = vsel %vm279, %v291, 0.0
    %296 = vadd.xlane.f32.xlu0 %v295
    %v297 = vpop.xlane.xlu0 %296
    %v298 = vlog2.pop %v294
    %v299 = vmul.f32 %v298, 0.6931472
    %v300 = vlog2.pop %v297
    %v301 = vmul.f32 %v300, 0.6931472
    %v302 = vsub.f32 %v286, %v299
    %v303 = vsub.f32 %v287, %v301
    %v304 = vld [vmem:[%s6] sm:$0x3]
    %vm305 = vcmask 130048
    %v307 = vsel %vm305, %v304, 0
    %309 = vmatpush.msra.mxu0 0.0
    %310 = vmatpush.msra.mxu0 0.0
    %311 = vmatpush.msra.mxu0 0.0
    %312 = vmatpush.msra.mxu0 0.0
    %313 = vmatpush.msra.mxu0 0.0
    %314 = vmatpush.msra.mxu0 0.0
    %315 = vmatpush.msra.mxu0 0.0
    %316 = vmatpush.msra.mxu0 0.0
    %317 = vmatpush.msra.mxu0 0.0
    %318 = vmatpush.msra.mxu0 0.0
    %319 = vmatpush.msra.mxu0 0.0
    %320 = vmatpush.msra.mxu0 0.0
    %321 = vmatpush.msra.mxu0 0.0
    %322 = vmatpush.msra.mxu0 0.0
    %323 = vmatpush.msra.mxu0 %v303
    %324 = vmatpush.msra.mxu0 %v302
    %325 = vmatmul.f32.gmra.mxu0 %v307
    %v326 = vpop.f32.mrf.mxu0
    %v327 = vadd.f32 0.0, %v326
    %328 = vdwg.mxu0
    %vm329 = vcmask 33792
    %330 = vst.msk [vmem:[#allocation7] sm:$0x3] %vm329, %v327
    // Predicated region
    $region38: #{tpu_custom_call.1} parent=1 // pred_check
      _
    $region39: #{tpu_custom_call.1} parent=1 // pred_check_branch
      %332 = sbr.rel (0) target = $region41
    $region40: #{tpu_custom_call.1} parent=1 // pred_region
      %334 = vsyncadd [#allocation4], 0
      %s336 = sshll.u32 [#allocation7], 4
      %s337 = int_to_ptr.vmem [resolvable:$true] %s336
      %s338 = sshll.u32 %s7, 4
      %s339 = int_to_ptr.hbm [resolvable:$true] %s338
      %341 = dma.vmem_to_hbm [thread:$0]  %s337, 32, %s339, [#allocation4]
    $region41: #{tpu_custom_call.1} parent=1 // pred_fallthru
      _
    // Predicated region
    $region42: #{tpu_custom_call.1} parent=1 // pred_check
      _
    $region43: #{tpu_custom_call.1} parent=1 // pred_check_branch
      %343 = sbr.rel (0) target = $region45
    $region44: #{tpu_custom_call.1} parent=1 // pred_region
      %345 = dma.done [#allocation4], 32
    $region45: #{tpu_custom_call.1} parent=1 // pred_fallthru
      _
    %346 = vsyncpa [#allocation3], 1
    %347 = vsyncpa [#allocation6], 1
    %348 = vsyncpa [#allocation4], 1

</llo_original>
